<compile_context>
chip_gen: v7x
topology: tpu7x:2x2x1
jax: 0.10.0
libtpu: 0.0.40
codegen_flags: <defaults>
</compile_context>

<pallas_src>
import math
from functools import partial

import jax
import jax.numpy as jnp
from jax import lax
from jax.experimental import pallas as pl
from jax.experimental.pallas import tpu as pltpu

LANE = 128
TB = 8          # names per grid block (sublane-aligned batch tile)
MAX_LEN = 16    # fixed padded name length -> single compiled kernel shape
IN_PAD = 128    # one-hot feature dim padded to a full lane (57 -> 128)


def _pad_to_lanes(n):
    return max(LANE, ((n + LANE - 1) // LANE) * LANE)


def rnn_batch_kernel(steps_ref, x_ref, lens_ref, h0_ref, wih_t_ref, whh_t_ref,
                     b_cell_ref, wlin_t_ref, blin_ref, out_ref, hn_ref,
                     prex_ref):
    """Batched whole-sequence tanh RNN + linear + softmax head (one batch block).

    steps_ref  : (1,) int32 SMEM   max true length over the whole batch
    x_ref      : (1, MAX_LEN*TB, IN_PAD)   block-local time-major: row = t*TB + b
    lens_ref   : (1, TB, 1) int32          per-name true lengths
    h0_ref     : (TB, H)                   initial hidden state
    wih_t_ref  : (IN_PAD, H)               W_ih pre-transposed, zero-padded rows
    whh_t_ref  : (H, H)                    W_hh pre-transposed
    b_cell_ref : (1, H)                    b_ih + b_hh pre-fused
    wlin_t_ref : (H, OUT_PAD)              W_lin pre-transposed, zero-padded lanes
    blin_ref   : (1, OUT_PAD)              pad lanes = -1e30 -> softmax prob ~ 0
    out_ref    : (TB, OUT_PAD)             softmax at each name's last step
    hn_ref     : (TB, H)                   final hidden state per name
    prex_ref   : (MAX_LEN*TB, H) scratch   x @ W_ih^T + b for every (t, b)
    """
    tb = h0_ref.shape[0]

    # Input projection (+ fused bias) for every (t, b) row in ONE MXU matmul.
    prex_ref[...] = (
        jnp.dot(x_ref[0], wih_t_ref[...], preferred_element_type=jnp.float32)
        + b_cell_ref[...])

    lens = lens_ref[0]          # (TB, 1) int32, stays in vregs (tiny)
    n_steps = steps_ref[0]      # dynamic loop bound from SMEM (no recompiles)

    def step(t, h):
        row = pl.multiple_of(t * tb, tb)
        pre = prex_ref[pl.ds(row, tb), :] + jnp.dot(
            h, whh_t_ref[...], preferred_element_type=jnp.float32)
        h_new = jnp.tanh(pre)
        # Freeze h once past this name's true length (variable-length batch).
        return jnp.where(t < lens, h_new, h)

    h_last = lax.fori_loop(0, n_steps, step, h0_ref[...])
    hn_ref[...] = h_last

    # Linear head + softmax(dim=-1) on each name's final hidden state.
    logits = (jnp.dot(h_last, wlin_t_ref[...],
                      preferred_element_type=jnp.float32) + blin_ref[...])
    m = jnp.max(logits, axis=-1, keepdims=True)
    e = jnp.exp(logits - m)
    s = jnp.sum(e, axis=-1, keepdims=True)
    inv = pl.reciprocal(s, approx=True)     # EUP slot
    inv = inv * (2.0 - s * inv)             # one Newton step -> ~f32 accuracy
    out_ref[...] = e * inv


def make_params(key, input_size, hidden_size, output_size):
    """PyTorch-style uniform(-1/sqrt(H), 1/sqrt(H)) init.

    Keeps the raw (PyTorch-layout) weights for the pure-JAX reference plus the
    pre-baked kernel layout (transposed / bias-fused / lane-padded).
    """
    assert input_size <= IN_PAD and hidden_size % LANE == 0
    ks = jax.random.split(key, 6)
    b = 1.0 / math.sqrt(hidden_size)
    w_ih = jax.random.uniform(ks[0], (hidden_size, input_size), jnp.float32, -b, b)
    w_hh = jax.random.uniform(ks[1], (hidden_size, hidden_size), jnp.float32, -b, b)
    b_ih = jax.random.uniform(ks[2], (hidden_size,), jnp.float32, -b, b)
    b_hh = jax.random.uniform(ks[3], (hidden_size,), jnp.float32, -b, b)
    w_lin = jax.random.uniform(ks[4], (output_size, hidden_size), jnp.float32, -b, b)
    b_lin = jax.random.uniform(ks[5], (output_size,), jnp.float32, -b, b)

    out_pad = _pad_to_lanes(output_size)
    return dict(
        # raw layout (reference only)
        w_ih=w_ih, w_hh=w_hh, b_ih=b_ih, b_hh=b_hh, w_lin=w_lin, b_lin=b_lin,
        # kernel layout, baked once
        wih_t=jnp.pad(w_ih.T, ((0, IN_PAD - input_size), (0, 0))),
        whh_t=w_hh.T,
        b_cell=(b_ih + b_hh)[None, :],
        wlin_t=jnp.pad(w_lin.T, ((0, 0), (0, out_pad - output_size))),
        blin=jnp.pad(b_lin, (0, out_pad - output_size),
                     constant_values=-1e30)[None, :],
        sizes=(input_size, hidden_size, output_size, out_pad),
    )


@partial(jax.jit, static_argnames=("sizes",))
def _rnn_batch_forward_jit(names_onehot, lens, hidden, wih_t, whh_t, b_cell,
                           wlin_t, blin, *, sizes):
    input_size, hidden_size, output_size, out_pad = sizes
    B, L, _ = names_onehot.shape
    assert L <= MAX_LEN, "increase MAX_LEN for longer names"
    b_pad = ((B + TB - 1) // TB) * TB
    nb = b_pad // TB

    # Pad batch -> multiple of TB, seq -> MAX_LEN, features -> IN_PAD (zeros).
    x = jnp.zeros((b_pad, MAX_LEN, IN_PAD), jnp.float32)
    x = x.at[:B, :L, :input_size].set(names_onehot.astype(jnp.float32))
    lens_p = jnp.zeros((b_pad,), jnp.int32).at[:B].set(lens.astype(jnp.int32))
    h0 = jnp.zeros((b_pad, hidden_size), jnp.float32).at[:B].set(hidden[0])

    # Block-local time-major layout: within batch block j, row = t*TB + b_local.
    x_blocks = (x.reshape(nb, TB, MAX_LEN, IN_PAD)
                 .transpose(0, 2, 1, 3)
                 .reshape(nb, MAX_LEN * TB, IN_PAD))
    lens_blocks = lens_p.reshape(nb, TB, 1)
    steps = jnp.max(lens_p).reshape(1).astype(jnp.int32)   # scalar prefetch

    out_padded, hn = pl.pallas_call(
        rnn_batch_kernel,
        out_shape=(jax.ShapeDtypeStruct((b_pad, out_pad), jnp.float32),
                   jax.ShapeDtypeStruct((b_pad, hidden_size), jnp.float32)),
        grid_spec=pltpu.PrefetchScalarGridSpec(
            num_scalar_prefetch=1,
            grid=(nb,),
            in_specs=[
                pl.BlockSpec((1, MAX_LEN * TB, IN_PAD),
                             lambda j, steps: (j, 0, 0)),                 # x
                pl.BlockSpec((1, TB, 1), lambda j, steps: (j, 0, 0)),     # lens
                pl.BlockSpec((TB, hidden_size), lambda j, steps: (j, 0)),  # h0
                pl.BlockSpec((IN_PAD, hidden_size),
                             lambda j, steps: (0, 0)),                    # wih_t
                pl.BlockSpec((hidden_size, hidden_size),
                             lambda j, steps: (0, 0)),                    # whh_t
                pl.BlockSpec((1, hidden_size), lambda j, steps: (0, 0)),  # b_cell
                pl.BlockSpec((hidden_size, out_pad),
                             lambda j, steps: (0, 0)),                    # wlin_t
                pl.BlockSpec((1, out_pad), lambda j, steps: (0, 0)),      # blin
            ],
            out_specs=(
                pl.BlockSpec((TB, out_pad), lambda j, steps: (j, 0)),
                pl.BlockSpec((TB, hidden_size), lambda j, steps: (j, 0)),
            ),
            scratch_shapes=[pltpu.VMEM((MAX_LEN * TB, hidden_size),
                                       jnp.float32)],
        ),
        compiler_params=pltpu.CompilerParams(
            dimension_semantics=("parallel",)),
    )(steps, x_blocks, lens_blocks, h0, wih_t, whh_t, b_cell, wlin_t, blin)

    return out_padded[:B, :output_size], hn[:B]


def rnn_batch_forward(params, names_onehot, lens, hidden):
    """Batched whole-name forward (the predict_one_name loop fused + batched).

    names_onehot : (B, L, input_size) one-hot name tensors, L <= MAX_LEN
    lens         : (B,) true lengths (positions >= len are ignored)
    hidden       : (num_layers=1, B, hidden_size) initial hidden state
    returns (softmax (B, output_size), hn (B, hidden_size))
    """
    return _rnn_batch_forward_jit(
        names_onehot, lens, hidden,
        params["wih_t"], params["whh_t"], params["b_cell"],
        params["wlin_t"], params["blin"], sizes=params["sizes"])


def rnn_forward(params, x, hidden):
    """Mirrors RNN.forward(input, hidden): x (1, n_letters), hidden (1, 1, H).

    Returns (softmax (1, 1, output_size), hn (1, 1, hidden_size)).
    """
    out, hn = rnn_batch_forward(params, x[:, None, :],
                                jnp.array([1], jnp.int32), hidden)
    return out[None, :, :], hn[None, :, :]


def init_hidden(hidden_size, batch=1, num_layers=1):
    return jnp.zeros((num_layers, batch, hidden_size), jnp.float32)


def rnn_batch_forward_ref(params, names_onehot, lens, hidden):
    """Pure-JAX reference (PyTorch-layout weights, per-step loop)."""
    B, L, _ = names_onehot.shape
    h = hidden[0]
    for t in range(L):
        x_t = names_onehot[:, t, :]
        h_new = jnp.tanh(x_t @ params["w_ih"].T + params["b_ih"]
                         + h @ params["w_hh"].T + params["b_hh"])
        h = jnp.where((t < lens)[:, None], h_new, h)
    logits = h @ params["w_lin"].T + params["b_lin"]
    return jax.nn.softmax(logits, axis=-1), h


if __name__ == "__main__":
    # n_letters-like input, the tutorial's n_hidden=128, 18 language categories.
    input_size, hidden_size, output_size = 57, 128, 18

    key = jax.random.PRNGKey(0)
    pkey, klet, klen = jax.random.split(key, 3)
    params = make_params(pkey, input_size, hidden_size, output_size)

    # --- single-step forward(), exactly the module's signature ---
    x1 = jax.nn.one_hot(jnp.array([3]), input_size, dtype=jnp.float32)  # (1, 57)
    h0 = init_hidden(hidden_size)                                        # (1,1,H)
    out1, hn1 = rnn_forward(params, x1, h0)
    jax.block_until_ready((out1, hn1))
    out1_ref, hn1_ref = rnn_batch_forward_ref(
        params, x1[:, None, :], jnp.array([1], jnp.int32), h0)
    assert out1.shape == (1, 1, output_size) and hn1.shape == (1, 1, hidden_size)
    assert jnp.allclose(out1[0], out1_ref, atol=1e-4), "single-step output mismatch"
    assert jnp.allclose(hn1[0], hn1_ref, atol=1e-4), "single-step hidden mismatch"

    # --- batched whole-name forward: 16 variable-length names, ONE kernel ---
    B, L = 16, 12
    lens = jax.random.randint(klen, (B,), 3, L + 1).astype(jnp.int32)
    letters = jax.random.randint(klet, (B, L), 0, input_size)
    names = jax.nn.one_hot(letters, input_size, dtype=jnp.float32)
    tmask = (jnp.arange(L)[None, :] < lens[:, None]).astype(jnp.float32)
    names = names * tmask[:, :, None]            # zero the padded positions
    h0b = init_hidden(hidden_size, batch=B)

    out, hn = rnn_batch_forward(params, names, lens, h0b)
    jax.block_until_ready((out, hn))
    out_ref, hn_ref = rnn_batch_forward_ref(params, names, lens, h0b)
    assert out.shape == (B, output_size) and hn.shape == (B, hidden_size)
    assert jnp.allclose(out, out_ref, atol=1e-4), "softmax output mismatch"
    assert jnp.allclose(hn, hn_ref, atol=1e-4), "hidden state mismatch"
    assert jnp.allclose(jnp.sum(out, axis=-1), 1.0, atol=1e-5)

    print("KERNEL_OK")
</pallas_src>

<mosaic_0001>
module attributes {stable_mosaic.version = 11 : i64} {
  func.func @rnn_batch_kernel(%arg0: i32, %arg1: memref<1xi32, #tpu.memory_space<smem>>, %arg2: memref<1x128x128xf32, #tpu.memory_space<vmem>>, %arg3: memref<1x8x1xi32, #tpu.memory_space<vmem>>, %arg4: memref<8x128xf32, #tpu.memory_space<vmem>>, %arg5: memref<128x128xf32, #tpu.memory_space<vmem>>, %arg6: memref<128x128xf32, #tpu.memory_space<vmem>>, %arg7: memref<1x128xf32, #tpu.memory_space<vmem>>, %arg8: memref<128x128xf32, #tpu.memory_space<vmem>>, %arg9: memref<1x128xf32, #tpu.memory_space<vmem>>, %arg10: memref<8x128xf32, #tpu.memory_space<vmem>>, %arg11: memref<8x128xf32, #tpu.memory_space<vmem>>, %arg12: memref<128x128xf32, #tpu.memory_space<vmem>>) attributes {dimension_semantics = [#tpu.dimension_semantics<parallel>], iteration_bounds = array<i64: 1>, scalar_prefetch = 1 : i64, scratch_operands = 1 : i64, tpu.core_type = #tpu.core_type<tc>, window_params = [{transform_indices = @transform_0, window_bounds = array<i64: 1, 128, 128>}, {transform_indices = @transform_1, window_bounds = array<i64: 1, 8, 1>}, {transform_indices = @transform_2, window_bounds = array<i64: 8, 128>}, {pipeline_mode = #tpu.pipeline_mode<synchronous>, transform_indices = @transform_3, window_bounds = array<i64: 128, 128>}, {pipeline_mode = #tpu.pipeline_mode<synchronous>, transform_indices = @transform_4, window_bounds = array<i64: 128, 128>}, {pipeline_mode = #tpu.pipeline_mode<synchronous>, transform_indices = @transform_5, window_bounds = array<i64: 1, 128>}, {pipeline_mode = #tpu.pipeline_mode<synchronous>, transform_indices = @transform_6, window_bounds = array<i64: 128, 128>}, {pipeline_mode = #tpu.pipeline_mode<synchronous>, transform_indices = @transform_7, window_bounds = array<i64: 1, 128>}, {transform_indices = @transform_8, window_bounds = array<i64: 8, 128>}, {transform_indices = @transform_9, window_bounds = array<i64: 8, 128>}]} {
    %c0 = arith.constant 0 : index
    %c0_0 = arith.constant 0 : index
    %c0_1 = arith.constant 0 : index
    %0 = vector.load %arg2[%c0, %c0_0, %c0_1] : memref<1x128x128xf32, #tpu.memory_space<vmem>>, vector<1x128x128xf32>
    %1 = vector.shape_cast %0 : vector<1x128x128xf32> to vector<128x128xf32>
    %c0_2 = arith.constant 0 : index
    %c0_3 = arith.constant 0 : index
    %2 = vector.load %arg5[%c0_2, %c0_3] : memref<128x128xf32, #tpu.memory_space<vmem>>, vector<128x128xf32>
    %cst = arith.constant dense<0.000000e+00> : vector<128x128xf32>
    %3 = tpu.matmul %1, %2, %cst {dimension_numbers = #tpu.dot_dimension_numbers<[1], [0], [0], [1], [0, 0, 1, 1], [], []>} : vector<128x128xf32>, vector<128x128xf32>, vector<128x128xf32> -> vector<128x128xf32>
    %c0_4 = arith.constant 0 : index
    %c0_5 = arith.constant 0 : index
    %4 = vector.load %arg7[%c0_4, %c0_5] : memref<1x128xf32, #tpu.memory_space<vmem>>, vector<1x128xf32>
    %5 = vector.broadcast %4 : vector<1x128xf32> to vector<128x128xf32>
    %6 = arith.addf %3, %5 : vector<128x128xf32>
    %c0_6 = arith.constant 0 : index
    %c0_7 = arith.constant 0 : index
    %7 = vector.load %arg12[%c0_6, %c0_7] : memref<128x128xf32, #tpu.memory_space<vmem>>, vector<128x128xf32>
    tpu.vector_store %arg12[%c0_6, %c0_7], %6 {strides = array<i32>} : memref<128x128xf32, #tpu.memory_space<vmem>>, vector<128x128xf32>,
    %c0_8 = arith.constant 0 : index
    %c0_9 = arith.constant 0 : index
    %c0_10 = arith.constant 0 : index
    %8 = vector.load %arg3[%c0_8, %c0_9, %c0_10] : memref<1x8x1xi32, #tpu.memory_space<vmem>>, vector<1x8x1xi32>
    %9 = vector.shape_cast %8 : vector<1x8x1xi32> to vector<8x1xi32>
    %c0_11 = arith.constant 0 : index
    %10 = memref.load %arg1[%c0_11] : memref<1xi32, #tpu.memory_space<smem>>
    %c0_12 = arith.constant 0 : index
    %c0_13 = arith.constant 0 : index
    %11 = vector.load %arg4[%c0_12, %c0_13] : memref<8x128xf32, #tpu.memory_space<vmem>>, vector<8x128xf32>
    %c0_i32 = arith.constant 0 : i32
    %12 = arith.subi %10, %c0_i32 : i32
    %13 = arith.addi %c0_i32, %12 : i32
    %c1_i32 = arith.constant 1 : i32
    %14 = scf.for %arg13 = %c0_i32 to %13 step %c1_i32 iter_args(%arg14 = %11) -> (vector<8x128xf32>)  : i32 {
      %c8_i32 = arith.constant 8 : i32
      %36 = arith.muli %arg13, %c8_i32 : i32
      %37 = tpu.assume_multiple %36, 8 : i32
      %38 = arith.index_cast %37 : i32 to index
      %c0_26 = arith.constant 0 : index
      %39 = vector.load %arg12[%38, %c0_26] : memref<128x128xf32, #tpu.memory_space<vmem>>, vector<8x128xf32>
      %c0_27 = arith.constant 0 : index
      %c0_28 = arith.constant 0 : index
      %40 = vector.load %arg6[%c0_27, %c0_28] : memref<128x128xf32, #tpu.memory_space<vmem>>, vector<128x128xf32>
      %cst_29 = arith.constant dense<0.000000e+00> : vector<8x128xf32>
      %41 = tpu.matmul %arg14, %40, %cst_29 {dimension_numbers = #tpu.dot_dimension_numbers<[1], [0], [0], [1], [0, 0, 1, 1], [], []>} : vector<8x128xf32>, vector<128x128xf32>, vector<8x128xf32> -> vector<8x128xf32>
      %42 = arith.addf %39, %41 : vector<8x128xf32>
      %43 = math.tanh %42 : vector<8x128xf32>
      %44 = vector.broadcast %arg13 : i32 to vector<8x1xi32>
      %45 = arith.cmpi slt, %44, %9 : vector<8x1xi32>
      %46 = vector.shape_cast %45 : vector<8x1xi1> to vector<8x1xi1>
      %47 = vector.broadcast %46 : vector<8x1xi1> to vector<8x128xi1>
      %48 = arith.select %47, %43, %arg14 : vector<8x128xi1>, vector<8x128xf32>
      scf.yield %48 : vector<8x128xf32>
    }
    %c0_14 = arith.constant 0 : index
    %c0_15 = arith.constant 0 : index
    %15 = vector.load %arg11[%c0_14, %c0_15] : memref<8x128xf32, #tpu.memory_space<vmem>>, vector<8x128xf32>
    tpu.vector_store %arg11[%c0_14, %c0_15], %14 {strides = array<i32>} : memref<8x128xf32, #tpu.memory_space<vmem>>, vector<8x128xf32>,
    %c0_16 = arith.constant 0 : index
    %c0_17 = arith.constant 0 : index
    %16 = vector.load %arg8[%c0_16, %c0_17] : memref<128x128xf32, #tpu.memory_space<vmem>>, vector<128x128xf32>
    %cst_18 = arith.constant dense<0.000000e+00> : vector<8x128xf32>
    %17 = tpu.matmul %14, %16, %cst_18 {dimension_numbers = #tpu.dot_dimension_numbers<[1], [0], [0], [1], [0, 0, 1, 1], [], []>} : vector<8x128xf32>, vector<128x128xf32>, vector<8x128xf32> -> vector<8x128xf32>
    %c0_19 = arith.constant 0 : index
    %c0_20 = arith.constant 0 : index
    %18 = vector.load %arg9[%c0_19, %c0_20] : memref<1x128xf32, #tpu.memory_space<vmem>>, vector<1x128xf32>
    %19 = vector.broadcast %18 : vector<1x128xf32> to vector<8x128xf32>
    %20 = arith.addf %17, %19 : vector<8x128xf32>
    %cst_21 = arith.constant dense<0xFF800000> : vector<8xf32>
    %21 = vector.multi_reduction <maximumf>, %20, %cst_21 [1] : vector<8x128xf32> to vector<8xf32>
    %22 = vector.shape_cast %21 : vector<8xf32> to vector<8x1xf32>
    %23 = vector.broadcast %22 : vector<8x1xf32> to vector<8x128xf32>
    %24 = arith.subf %20, %23 : vector<8x128xf32>
    %25 = math.exp %24 : vector<8x128xf32>
    %cst_22 = arith.constant dense<0.000000e+00> : vector<8xf32>
    %26 = vector.multi_reduction <add>, %25, %cst_22 [1] : vector<8x128xf32> to vector<8xf32>
    %27 = vector.shape_cast %26 : vector<8xf32> to vector<8x1xf32>
    %28 = tpu.reciprocal %27 {approx = true} : vector<8x1xf32> -> vector<8x1xf32>
    %29 = arith.mulf %27, %28 : vector<8x1xf32>
    %cst_23 = arith.constant 2.000000e+00 : f32
    %30 = vector.broadcast %cst_23 : f32 to vector<8x1xf32>
    %31 = arith.subf %30, %29 : vector<8x1xf32>
    %32 = arith.mulf %28, %31 : vector<8x1xf32>
    %33 = vector.broadcast %32 : vector<8x1xf32> to vector<8x128xf32>
    %34 = arith.mulf %25, %33 : vector<8x128xf32>
    %c0_24 = arith.constant 0 : index
    %c0_25 = arith.constant 0 : index
    %35 = vector.load %arg10[%c0_24, %c0_25] : memref<8x128xf32, #tpu.memory_space<vmem>>, vector<8x128xf32>
    tpu.vector_store %arg10[%c0_24, %c0_25], %34 {strides = array<i32>} : memref<8x128xf32, #tpu.memory_space<vmem>>, vector<8x128xf32>,
    return
  }
  func.func @transform_0(%arg0: i32, %arg1: memref<1xi32, #tpu.memory_space<smem>>) -> (i32, i32, i32) {
    %c0_i32 = arith.constant 0 : i32
    %c0_i32_0 = arith.constant 0 : i32
    %c0_i32_1 = arith.constant 0 : i32
    return %arg0, %c0_i32, %c0_i32_0 : i32, i32, i32
  }
  func.func @transform_1(%arg0: i32, %arg1: memref<1xi32, #tpu.memory_space<smem>>) -> (i32, i32, i32) {
    %c0_i32 = arith.constant 0 : i32
    %c0_i32_0 = arith.constant 0 : i32
    %c0_i32_1 = arith.constant 0 : i32
    return %arg0, %c0_i32, %c0_i32_0 : i32, i32, i32
  }
  func.func @transform_2(%arg0: i32, %arg1: memref<1xi32, #tpu.memory_space<smem>>) -> (i32, i32) {
    %c0_i32 = arith.constant 0 : i32
    %c0_i32_0 = arith.constant 0 : i32
    return %arg0, %c0_i32 : i32, i32
  }
  func.func @transform_3(%arg0: i32, %arg1: memref<1xi32, #tpu.memory_space<smem>>) -> (i32, i32) {
    %c0_i32 = arith.constant 0 : i32
    %c0_i32_0 = arith.constant 0 : i32
    %c0_i32_1 = arith.constant 0 : i32
    return %c0_i32, %c0_i32_0 : i32, i32
  }
  func.func @transform_4(%arg0: i32, %arg1: memref<1xi32, #tpu.memory_space<smem>>) -> (i32, i32) {
    %c0_i32 = arith.constant 0 : i32
    %c0_i32_0 = arith.constant 0 : i32
    %c0_i32_1 = arith.constant 0 : i32
    return %c0_i32, %c0_i32_0 : i32, i32
  }
  func.func @transform_5(%arg0: i32, %arg1: memref<1xi32, #tpu.memory_space<smem>>) -> (i32, i32) {
    %c0_i32 = arith.constant 0 : i32
    %c0_i32_0 = arith.constant 0 : i32
    %c0_i32_1 = arith.constant 0 : i32
    return %c0_i32, %c0_i32_0 : i32, i32
  }
  func.func @transform_6(%arg0: i32, %arg1: memref<1xi32, #tpu.memory_space<smem>>) -> (i32, i32) {
    %c0_i32 = arith.constant 0 : i32
    %c0_i32_0 = arith.constant 0 : i32
    %c0_i32_1 = arith.constant 0 : i32
    return %c0_i32, %c0_i32_0 : i32, i32
  }
  func.func @transform_7(%arg0: i32, %arg1: memref<1xi32, #tpu.memory_space<smem>>) -> (i32, i32) {
    %c0_i32 = arith.constant 0 : i32
    %c0_i32_0 = arith.constant 0 : i32
    %c0_i32_1 = arith.constant 0 : i32
    return %c0_i32, %c0_i32_0 : i32, i32
  }
  func.func @transform_8(%arg0: i32, %arg1: memref<1xi32, #tpu.memory_space<smem>>) -> (i32, i32) {
    %c0_i32 = arith.constant 0 : i32
    %c0_i32_0 = arith.constant 0 : i32
    return %arg0, %c0_i32 : i32, i32
  }
  func.func @transform_9(%arg0: i32, %arg1: memref<1xi32, #tpu.memory_space<smem>>) -> (i32, i32) {
    %c0_i32 = arith.constant 0 : i32
    %c0_i32_0 = arith.constant 0 : i32
    return %arg0, %c0_i32 : i32, i32
  }
}

</mosaic_0001>

<llo_original>
// kernel: _rnn_batch_forward_jit.1
$region0: #{_rnn_batch_forward_jit.1}
  #allocation0 [shape = 'u32[]', space=smem, size = 0x4, offset = 0x4, fixed_abs, tag = 'smem constant byte address 0x4 - core index']
  #allocation1 [shape = 'u32[144,128]{1,0:T(1,128)}', space=vmem, size = 0x12000, scoped, tag = 'internal scratch']
  #allocation2 [shape = 'f32[128,128]{1,0:T(8,128)}', space=vmem, size = 0x10000, scoped, tag = 'scratch operand']
  #allocation3 [shape = 's32[1]{0}', space=sflag, size = 0x4, scoped, tag = 'scoped memory for _rnn_batch_forward_jit.1']
  #allocation4 [shape = 's32[1]{0:T(128)S(6)}', space=smem, size = 0x200, scoped, tag = 'prefetched SMEM operand 0']
  %s0 = inlined_call_operand.<no memory space> [shape: s32[1], index: 0, kind: input, shape index: {}]
  %s1 = inlined_call_operand.vmem [shape: f32[1,128,128], index: 1, kind: input, shape index: {}]
  %s2 = inlined_call_operand.vmem [shape: s32[1,8,1], index: 2, kind: input, shape index: {}]
  %s3 = inlined_call_operand.vmem [shape: f32[8,128], index: 3, kind: input, shape index: {}]
  %s4 = inlined_call_operand.vmem [shape: f32[128,128], index: 4, kind: input, shape index: {}]
  %s5 = inlined_call_operand.vmem [shape: f32[128,128], index: 5, kind: input, shape index: {}]
  %s6 = inlined_call_operand.vmem [shape: f32[1,128], index: 6, kind: input, shape index: {}]
  %s7 = inlined_call_operand.vmem [shape: f32[128,128], index: 7, kind: input, shape index: {}]
  %s8 = inlined_call_operand.vmem [shape: f32[1,128], index: 8, kind: input, shape index: {}]
  %s9 = inlined_call_operand.vmem [shape: f32[8,128], index: 9, kind: output, shape index: {0}]
  %s10 = inlined_call_operand.vmem [shape: f32[8,128], index: 10, kind: output, shape index: {1}]
  %11 = xla_tuple %s9, %s10
  %s12 = sld [smem:[#allocation0]]
  $region57: #{_rnn_batch_forward_jit.1} parent=0
    _
  %s14 = ssub.s32 1, %s12
  %s15 = scalar_select 0, %s14, %s12
  %16 = sst [smem:[#allocation4]] %s0
  // Predicated region
  $region2: #{_rnn_batch_forward_jit.1} parent=0 // pred_check
    _
  $region3: #{_rnn_batch_forward_jit.1} parent=0 // pred_check_branch
    %18 = sbr.rel (0) target = $region5
  $region4: #{_rnn_batch_forward_jit.1} parent=0 // pred_region
    _
  $region5: #{_rnn_batch_forward_jit.1} parent=0 // pred_fallthru
    _
  // Predicated region
  $region6: #{_rnn_batch_forward_jit.1} parent=0 // pred_check
    _
  $region7: #{_rnn_batch_forward_jit.1} parent=0 // pred_check_branch
    %20 = sbr.rel (0) target = $region9
  $region8: #{_rnn_batch_forward_jit.1} parent=0 // pred_region
    _
  $region9: #{_rnn_batch_forward_jit.1} parent=0 // pred_fallthru
    _
  // Predicated region
  $region10: #{_rnn_batch_forward_jit.1} parent=0 // pred_check
    _
  $region11: #{_rnn_batch_forward_jit.1} parent=0 // pred_check_branch
    %22 = sbr.rel (0) target = $region13
  $region12: #{_rnn_batch_forward_jit.1} parent=0 // pred_region
    _
  $region13: #{_rnn_batch_forward_jit.1} parent=0 // pred_fallthru
    _
  // Predicated region
  $region14: #{_rnn_batch_forward_jit.1} parent=0 // pred_check
    _
  $region15: #{_rnn_batch_forward_jit.1} parent=0 // pred_check_branch
    %24 = sbr.rel (0) target = $region17
  $region16: #{_rnn_batch_forward_jit.1} parent=0 // pred_region
    _
  $region17: #{_rnn_batch_forward_jit.1} parent=0 // pred_fallthru
    _
  // Predicated region
  $region18: #{_rnn_batch_forward_jit.1} parent=0 // pred_check
    _
  $region19: #{_rnn_batch_forward_jit.1} parent=0 // pred_check_branch
    %26 = sbr.rel (0) target = $region21
  $region20: #{_rnn_batch_forward_jit.1} parent=0 // pred_region
    _
  $region21: #{_rnn_batch_forward_jit.1} parent=0 // pred_fallthru
    _
  // Predicated region
  $region22: #{_rnn_batch_forward_jit.1} parent=0 // pred_check
    _
  $region23: #{_rnn_batch_forward_jit.1} parent=0 // pred_check_branch
    %28 = sbr.rel (0) target = $region25
  $region24: #{_rnn_batch_forward_jit.1} parent=0 // pred_region
    _
  $region25: #{_rnn_batch_forward_jit.1} parent=0 // pred_fallthru
    _
  // Predicated region
  $region26: #{_rnn_batch_forward_jit.1} parent=0 // pred_check
    _
  $region27: #{_rnn_batch_forward_jit.1} parent=0 // pred_check_branch
    %30 = sbr.rel (0) target = $region29
  $region28: #{_rnn_batch_forward_jit.1} parent=0 // pred_region
    _
  $region29: #{_rnn_batch_forward_jit.1} parent=0 // pred_fallthru
    _
  // Predicated region
  $region30: #{_rnn_batch_forward_jit.1} parent=0 // pred_check
    _
  $region31: #{_rnn_batch_forward_jit.1} parent=0 // pred_check_branch
    %32 = sbr.rel (0) target = $region33
  $region32: #{_rnn_batch_forward_jit.1} parent=0 // pred_region
    _
  $region33: #{_rnn_batch_forward_jit.1} parent=0 // pred_fallthru
    _
  %v33 = vld [vmem:[%s1] sm:$0xff]
  %v34 = vld [vmem:[%s1 + $0x8] sm:$0xff]
  %v35 = vld [vmem:[%s1 + $0x10] sm:$0xff]
  %v36 = vld [vmem:[%s1 + $0x18] sm:$0xff]
  %v37 = vld [vmem:[%s1 + $0x20] sm:$0xff]
  %v38 = vld [vmem:[%s1 + $0x28] sm:$0xff]
  %v39 = vld [vmem:[%s1 + $0x30] sm:$0xff]
  %v40 = vld [vmem:[%s1 + $0x38] sm:$0xff]
  %v41 = vld [vmem:[%s1 + $0x40] sm:$0xff]
  %v42 = vld [vmem:[%s1 + $0x48] sm:$0xff]
  %v43 = vld [vmem:[%s1 + $0x50] sm:$0xff]
  %v44 = vld [vmem:[%s1 + $0x58] sm:$0xff]
  %v45 = vld [vmem:[%s1 + $0x60] sm:$0xff]
  %v46 = vld [vmem:[%s1 + $0x68] sm:$0xff]
  %v47 = vld [vmem:[%s1 + $0x70] sm:$0xff]
  %v48 = vld [vmem:[%s1 + $0x78] sm:$0xff]
  %v49 = vld [vmem:[%s4] sm:$0xff]
  %v50 = vld [vmem:[%s4 + $0x8] sm:$0xff]
  %v51 = vld [vmem:[%s4 + $0x10] sm:$0xff]
  %v52 = vld [vmem:[%s4 + $0x18] sm:$0xff]
  %v53 = vld [vmem:[%s4 + $0x20] sm:$0xff]
  %v54 = vld [vmem:[%s4 + $0x28] sm:$0xff]
  %v55 = vld [vmem:[%s4 + $0x30] sm:$0xff]
  %v56 = vld [vmem:[%s4 + $0x38] sm:$0xff]
  %v57 = vld [vmem:[%s4 + $0x40] sm:$0xff]
  %v58 = vld [vmem:[%s4 + $0x48] sm:$0xff]
  %v59 = vld [vmem:[%s4 + $0x50] sm:$0xff]
  %v60 = vld [vmem:[%s4 + $0x58] sm:$0xff]
  %v61 = vld [vmem:[%s4 + $0x60] sm:$0xff]
  %v62 = vld [vmem:[%s4 + $0x68] sm:$0xff]
  %v63 = vld [vmem:[%s4 + $0x70] sm:$0xff]
  %v64 = vld [vmem:[%s4 + $0x78] sm:$0xff]
  %v65 = vld [vmem:[%s6] sm:$0x1]
  %v67 = vlaneseq
  %v68 = vshrl.u32 %v67, 7
  %v69 = vsub.s32 0, %v68
  %v70 = vrot.slane %v65, %v69
  %72 = vmatprep.subr.mxu0 0.0
  %73 = vmatpush1.msra.mxu0 %v49
  %74 = vmatprep.subr.mxu0 0.0
  %75 = vmatpush1.msra.mxu0 %v50
  %76 = vmatprep.subr.mxu0 0.0
  %77 = vmatpush1.msra.mxu0 %v51
  %78 = vmatprep.subr.mxu0 0.0
  %79 = vmatpush1.msra.mxu0 %v52
  %80 = vmatprep.subr.mxu0 0.0
  %81 = vmatpush1.msra.mxu0 %v53
  %82 = vmatprep.subr.mxu0 0.0
  %83 = vmatpush1.msra.mxu0 %v54
  %84 = vmatprep.subr.mxu0 0.0
  %85 = vmatpush1.msra.mxu0 %v55
  %86 = vmatprep.subr.mxu0 0.0
  %87 = vmatpush1.msra.mxu0 %v56
  %88 = vmatprep.subr.mxu0 0.0
  %89 = vmatpush1.msra.mxu0 %v57
  %90 = vmatprep.subr.mxu0 0.0
  %91 = vmatpush1.msra.mxu0 %v58
  %92 = vmatprep.subr.mxu0 0.0
  %93 = vmatpush1.msra.mxu0 %v59
  %94 = vmatprep.subr.mxu0 0.0
  %95 = vmatpush1.msra.mxu0 %v60
  %96 = vmatprep.subr.mxu0 0.0
  %97 = vmatpush1.msra.mxu0 %v61
  %98 = vmatprep.subr.mxu0 0.0
  %99 = vmatpush1.msra.mxu0 %v62
  %100 = vmatprep.subr.mxu0 0.0
  %101 = vmatpush1.msra.mxu0 %v63
  %102 = vmatprep.subr.mxu0 0.0
  %103 = vmatpush1.msra.mxu0 %v64
  %104 = vmatprep.subr.mxu0 0.0
  %105 = vmatpush1.msra.mxu0 0.0
  %106 = vmatprep.subr.mxu0 0.0
  %107 = vmatpush1.msra.mxu0 0.0
  %108 = vmatprep.subr.mxu0 0.0
  %109 = vmatpush1.msra.mxu0 0.0
  %110 = vmatprep.subr.mxu0 0.0
  %111 = vmatpush1.msra.mxu0 0.0
  %112 = vmatprep.subr.mxu0 0.0
  %113 = vmatpush1.msra.mxu0 0.0
  %114 = vmatprep.subr.mxu0 0.0
  %115 = vmatpush1.msra.mxu0 0.0
  %116 = vmatprep.subr.mxu0 0.0
  %117 = vmatpush1.msra.mxu0 0.0
  %118 = vmatprep.subr.mxu0 0.0
  %119 = vmatpush1.msra.mxu0 0.0
  %120 = vmatprep.subr.mxu0 0.0
  %121 = vmatpush1.msra.mxu0 0.0
  %122 = vmatprep.subr.mxu0 0.0
  %123 = vmatpush1.msra.mxu0 0.0
  %124 = vmatprep.subr.mxu0 0.0
  %125 = vmatpush1.msra.mxu0 0.0
  %126 = vmatprep.subr.mxu0 0.0
  %127 = vmatpush1.msra.mxu0 0.0
  %128 = vmatprep.subr.mxu0 0.0
  %129 = vmatpush1.msra.mxu0 0.0
  %130 = vmatprep.subr.mxu0 0.0
  %131 = vmatpush1.msra.mxu0 0.0
  %132 = vmatprep.subr.mxu0 0.0
  %133 = vmatpush1.msra.mxu0 0.0
  %134 = vmatprep.subr.mxu0 0.0
  %135 = vmatpush1.msra.mxu0 0.0
  %136 = vmatprep.mubr.f32.mxu0 0.0
  %137 = vmatmul.mubr.f32.gmra.mrb[0].mxu0 %v33
  %v138 = vpop.f32.mrb[0].mxu0
  %v139 = vadd.f32 %v70, %v138
  %v140 = vpop.f32.mrb[0].mxu0
  %141 = vmatprep.mubr.f32.mxu0 0.0
  %142 = vmatmul.mubr.f32.gmra.mrb[0].mxu0 %v34
  %v143 = vpop.f32.mrb[0].mxu0
  %v144 = vadd.f32 %v70, %v143
  %v145 = vpop.f32.mrb[0].mxu0
  %146 = vmatprep.mubr.f32.mxu0 0.0
  %147 = vmatmul.mubr.f32.gmra.mrb[0].mxu0 %v35
  %v148 = vpop.f32.mrb[0].mxu0
  %v149 = vadd.f32 %v70, %v148
  %v150 = vpop.f32.mrb[0].mxu0
  %151 = vmatprep.mubr.f32.mxu0 0.0
  %152 = vmatmul.mubr.f32.gmra.mrb[0].mxu0 %v36
  %v153 = vpop.f32.mrb[0].mxu0
  %v154 = vadd.f32 %v70, %v153
  %v155 = vpop.f32.mrb[0].mxu0
  %156 = vmatprep.mubr.f32.mxu0 0.0
  %157 = vmatmul.mubr.f32.gmra.mrb[0].mxu0 %v37
  %v158 = vpop.f32.mrb[0].mxu0
  %v159 = vadd.f32 %v70, %v158
  %v160 = vpop.f32.mrb[0].mxu0
  %161 = vmatprep.mubr.f32.mxu0 0.0
  %162 = vmatmul.mubr.f32.gmra.mrb[0].mxu0 %v38
  %v163 = vpop.f32.mrb[0].mxu0
  %v164 = vadd.f32 %v70, %v163
  %v165 = vpop.f32.mrb[0].mxu0
  %166 = vmatprep.mubr.f32.mxu0 0.0
  %167 = vmatmul.mubr.f32.gmra.mrb[0].mxu0 %v39
  %v168 = vpop.f32.mrb[0].mxu0
  %v169 = vadd.f32 %v70, %v168
  %v170 = vpop.f32.mrb[0].mxu0
  %171 = vmatprep.mubr.f32.mxu0 0.0
  %172 = vmatmul.mubr.f32.gmra.mrb[0].mxu0 %v40
  %v173 = vpop.f32.mrb[0].mxu0
  %v174 = vadd.f32 %v70, %v173
  %v175 = vpop.f32.mrb[0].mxu0
  %176 = vmatprep.mubr.f32.mxu0 0.0
  %177 = vmatmul.mubr.f32.gmra.mrb[0].mxu0 %v41
  %v178 = vpop.f32.mrb[0].mxu0
  %v179 = vadd.f32 %v70, %v178
  %v180 = vpop.f32.mrb[0].mxu0
  %181 = vmatprep.mubr.f32.mxu0 0.0
  %182 = vmatmul.mubr.f32.gmra.mrb[0].mxu0 %v42
  %v183 = vpop.f32.mrb[0].mxu0
  %v184 = vadd.f32 %v70, %v183
  %v185 = vpop.f32.mrb[0].mxu0
  %186 = vmatprep.mubr.f32.mxu0 0.0
  %187 = vmatmul.mubr.f32.gmra.mrb[0].mxu0 %v43
  %v188 = vpop.f32.mrb[0].mxu0
  %v189 = vadd.f32 %v70, %v188
  %v190 = vpop.f32.mrb[0].mxu0
  %191 = vmatprep.mubr.f32.mxu0 0.0
  %192 = vmatmul.mubr.f32.gmra.mrb[0].mxu0 %v44
  %v193 = vpop.f32.mrb[0].mxu0
  %v194 = vadd.f32 %v70, %v193
  %v195 = vpop.f32.mrb[0].mxu0
  %196 = vmatprep.mubr.f32.mxu0 0.0
  %197 = vmatmul.mubr.f32.gmra.mrb[0].mxu0 %v45
  %v198 = vpop.f32.mrb[0].mxu0
  %v199 = vadd.f32 %v70, %v198
  %v200 = vpop.f32.mrb[0].mxu0
  %201 = vmatprep.mubr.f32.mxu0 0.0
  %202 = vmatmul.mubr.f32.gmra.mrb[0].mxu0 %v46
  %v203 = vpop.f32.mrb[0].mxu0
  %v204 = vadd.f32 %v70, %v203
  %v205 = vpop.f32.mrb[0].mxu0
  %206 = vmatprep.mubr.f32.mxu0 0.0
  %207 = vmatmul.mubr.f32.gmra.mrb[0].mxu0 %v47
  %v208 = vpop.f32.mrb[0].mxu0
  %v209 = vadd.f32 %v70, %v208
  %v210 = vpop.f32.mrb[0].mxu0
  %211 = vmatprep.mubr.f32.mxu0 0.0
  %212 = vmatmul.mubr.f32.gmra.mrb[0].mxu0 %v48
  %v213 = vpop.f32.mrb[0].mxu0
  %v214 = vadd.f32 %v70, %v213
  %v215 = vpop.f32.mrb[0].mxu0
  %216 = vdwg.mxu0
  %217 = vst [vmem:[#allocation2] sm:$0xff] %v139
  %218 = vst [vmem:[#allocation2 + $0x8] sm:$0xff] %v144
  %219 = vst [vmem:[#allocation2 + $0x10] sm:$0xff] %v149
  %220 = vst [vmem:[#allocation2 + $0x18] sm:$0xff] %v154
  %221 = vst [vmem:[#allocation2 + $0x20] sm:$0xff] %v159
  %222 = vst [vmem:[#allocation2 + $0x28] sm:$0xff] %v164
  %223 = vst [vmem:[#allocation2 + $0x30] sm:$0xff] %v169
  %224 = vst [vmem:[#allocation2 + $0x38] sm:$0xff] %v174
  %225 = vst [vmem:[#allocation2 + $0x40] sm:$0xff] %v179
  %226 = vst [vmem:[#allocation2 + $0x48] sm:$0xff] %v184
  %227 = vst [vmem:[#allocation2 + $0x50] sm:$0xff] %v189
  %228 = vst [vmem:[#allocation2 + $0x58] sm:$0xff] %v194
  %229 = vst [vmem:[#allocation2 + $0x60] sm:$0xff] %v199
  %230 = vst [vmem:[#allocation2 + $0x68] sm:$0xff] %v204
  %231 = vst [vmem:[#allocation2 + $0x70] sm:$0xff] %v209
  %232 = vst [vmem:[#allocation2 + $0x78] sm:$0xff] %v214
  %v233 = vld [vmem:[%s2] sm:$0xff]
  %s234 = sld [smem:[#allocation4]]
  %v235 = vld [vmem:[%s3] sm:$0xff]
  // While loop
  $region34: #{_rnn_batch_forward_jit.1} parent=0 // loop_pre_header
    _
  $region35: #{_rnn_batch_forward_jit.1} parent=0 // loop_header
    %s237 = sphi 0, %s239
    %p238 = scmp.ge.s32.totalorder %s237, %s234
    %v242 = vphi %v235, %v341
  $region36: #{_rnn_batch_forward_jit.1} parent=0 // loop_header_branch
    %241 = sbr.rel (%p238) target = $region40
  $region37: #{_rnn_batch_forward_jit.1} parent=0 // loop_body
    %s243 = smul.u32 %s237, 8
    %s244 = scalar_lea.vmem [#allocation2], %s243
    %v245 = vld [vmem:[%s244] sm:$0xff]
    %v246 = vld [vmem:[%s5] sm:$0xff]
    %v247 = vld [vmem:[%s5 + $0x8] sm:$0xff]
    %v248 = vld [vmem:[%s5 + $0x10] sm:$0xff]
    %v249 = vld [vmem:[%s5 + $0x18] sm:$0xff]
    %v250 = vld [vmem:[%s5 + $0x20] sm:$0xff]
    %v251 = vld [vmem:[%s5 + $0x28] sm:$0xff]
    %v252 = vld [vmem:[%s5 + $0x30] sm:$0xff]
    %v253 = vld [vmem:[%s5 + $0x38] sm:$0xff]
    %v254 = vld [vmem:[%s5 + $0x40] sm:$0xff]
    %v255 = vld [vmem:[%s5 + $0x48] sm:$0xff]
    %v256 = vld [vmem:[%s5 + $0x50] sm:$0xff]
    %v257 = vld [vmem:[%s5 + $0x58] sm:$0xff]
    %v258 = vld [vmem:[%s5 + $0x60] sm:$0xff]
    %v259 = vld [vmem:[%s5 + $0x68] sm:$0xff]
    %v260 = vld [vmem:[%s5 + $0x70] sm:$0xff]
    %v261 = vld [vmem:[%s5 + $0x78] sm:$0xff]
    %262 = vmatprep.subr.mxu0 0.0
    %263 = vmatpush1.msra.mxu0 %v246
    %264 = vmatprep.subr.mxu0 0.0
    %265 = vmatpush1.msra.mxu0 %v247
    %266 = vmatprep.subr.mxu0 0.0
    %267 = vmatpush1.msra.mxu0 %v248
    %268 = vmatprep.subr.mxu0 0.0
    %269 = vmatpush1.msra.mxu0 %v249
    %270 = vmatprep.subr.mxu0 0.0
    %271 = vmatpush1.msra.mxu0 %v250
    %272 = vmatprep.subr.mxu0 0.0
    %273 = vmatpush1.msra.mxu0 %v251
    %274 = vmatprep.subr.mxu0 0.0
    %275 = vmatpush1.msra.mxu0 %v252
    %276 = vmatprep.subr.mxu0 0.0
    %277 = vmatpush1.msra.mxu0 %v253
    %278 = vmatprep.subr.mxu0 0.0
    %279 = vmatpush1.msra.mxu0 %v254
    %280 = vmatprep.subr.mxu0 0.0
    %281 = vmatpush1.msra.mxu0 %v255
    %282 = vmatprep.subr.mxu0 0.0
    %283 = vmatpush1.msra.mxu0 %v256
    %284 = vmatprep.subr.mxu0 0.0
    %285 = vmatpush1.msra.mxu0 %v257
    %286 = vmatprep.subr.mxu0 0.0
    %287 = vmatpush1.msra.mxu0 %v258
    %288 = vmatprep.subr.mxu0 0.0
    %289 = vmatpush1.msra.mxu0 %v259
    %290 = vmatprep.subr.mxu0 0.0
    %291 = vmatpush1.msra.mxu0 %v260
    %292 = vmatprep.subr.mxu0 0.0
    %293 = vmatpush1.msra.mxu0 %v261
    %294 = vmatprep.subr.mxu0 0.0
    %295 = vmatpush1.msra.mxu0 0.0
    %296 = vmatprep.subr.mxu0 0.0
    %297 = vmatpush1.msra.mxu0 0.0
    %298 = vmatprep.subr.mxu0 0.0
    %299 = vmatpush1.msra.mxu0 0.0
    %300 = vmatprep.subr.mxu0 0.0
    %301 = vmatpush1.msra.mxu0 0.0
    %302 = vmatprep.subr.mxu0 0.0
    %303 = vmatpush1.msra.mxu0 0.0
    %304 = vmatprep.subr.mxu0 0.0
    %305 = vmatpush1.msra.mxu0 0.0
    %306 = vmatprep.subr.mxu0 0.0
    %307 = vmatpush1.msra.mxu0 0.0
    %308 = vmatprep.subr.mxu0 0.0
    %309 = vmatpush1.msra.mxu0 0.0
    %310 = vmatprep.subr.mxu0 0.0
    %311 = vmatpush1.msra.mxu0 0.0
    %312 = vmatprep.subr.mxu0 0.0
    %313 = vmatpush1.msra.mxu0 0.0
    %314 = vmatprep.subr.mxu0 0.0
    %315 = vmatpush1.msra.mxu0 0.0
    %316 = vmatprep.subr.mxu0 0.0
    %317 = vmatpush1.msra.mxu0 0.0
    %318 = vmatprep.subr.mxu0 0.0
    %319 = vmatpush1.msra.mxu0 0.0
    %320 = vmatprep.subr.mxu0 0.0
    %321 = vmatpush1.msra.mxu0 0.0
    %322 = vmatprep.subr.mxu0 0.0
    %323 = vmatpush1.msra.mxu0 0.0
    %324 = vmatprep.subr.mxu0 0.0
    %325 = vmatpush1.msra.mxu0 0.0
    %326 = vmatprep.mubr.f32.mxu0 0.0
    %327 = vmatmul.mubr.f32.gmra.mrb[0].mxu0 %v242
    %v328 = vpop.f32.mrb[0].mxu0
    %v329 = vadd.f32 0.0, %v328
    %v330 = vpop.f32.mrb[0].mxu0
    %331 = vdwg.mxu0
    %v332 = vadd.f32 %v245, %v329
    %v333 = vtanh.pop %v332
    %v334 = vstv %s237
    %vm335 = vcmp.lt.s32.totalorder %v334, %v233
    %v336 = vsel %vm335, 1, 0
    %337 = vset.pattern.permute.xlu0 0
    %338 = vperm.xlu0 %337, %v336
    %v339 = vpop.permute.xlu0 %338
    %vm340 = vcmp.eq.s32.totalorder %v339, 1
    %v341 = vsel %vm340, %v333, %v242
  $region38: #{_rnn_batch_forward_jit.1} parent=0 // loop_footer
    %s239 = sadd.s32 %s237, 1
  $region39: #{_rnn_batch_forward_jit.1} parent=0 // loop_footer_branch
    %236 = sbr.rel target = $region35
  $region40: #{_rnn_batch_forward_jit.1} parent=0 // loop_exit
    _
  %342 = vst [vmem:[%s10] sm:$0xff] %v242
  %v343 = vld [vmem:[%s7] sm:$0xff]
  %v344 = vld [vmem:[%s7 + $0x8] sm:$0xff]
  %v345 = vld [vmem:[%s7 + $0x10] sm:$0xff]
  %v346 = vld [vmem:[%s7 + $0x18] sm:$0xff]
  %v347 = vld [vmem:[%s7 + $0x20] sm:$0xff]
  %v348 = vld [vmem:[%s7 + $0x28] sm:$0xff]
  %v349 = vld [vmem:[%s7 + $0x30] sm:$0xff]
  %v350 = vld [vmem:[%s7 + $0x38] sm:$0xff]
  %v351 = vld [vmem:[%s7 + $0x40] sm:$0xff]
  %v352 = vld [vmem:[%s7 + $0x48] sm:$0xff]
  %v353 = vld [vmem:[%s7 + $0x50] sm:$0xff]
  %v354 = vld [vmem:[%s7 + $0x58] sm:$0xff]
  %v355 = vld [vmem:[%s7 + $0x60] sm:$0xff]
  %v356 = vld [vmem:[%s7 + $0x68] sm:$0xff]
  %v357 = vld [vmem:[%s7 + $0x70] sm:$0xff]
  %v358 = vld [vmem:[%s7 + $0x78] sm:$0xff]
  %v359 = vld [vmem:[%s8] sm:$0x1]
  %v361 = vlaneseq
  %v362 = vshrl.u32 %v361, 7
  %v363 = vsub.s32 0, %v362
  %v364 = vrot.slane %v359, %v363
  %366 = vmatprep.subr.mxu0 0.0
  %367 = vmatpush1.msra.mxu0 %v343
  %368 = vmatprep.subr.mxu0 0.0
  %369 = vmatpush1.msra.mxu0 %v344
  %370 = vmatprep.subr.mxu0 0.0
  %371 = vmatpush1.msra.mxu0 %v345
  %372 = vmatprep.subr.mxu0 0.0
  %373 = vmatpush1.msra.mxu0 %v346
  %374 = vmatprep.subr.mxu0 0.0
  %375 = vmatpush1.msra.mxu0 %v347
  %376 = vmatprep.subr.mxu0 0.0
  %377 = vmatpush1.msra.mxu0 %v348
  %378 = vmatprep.subr.mxu0 0.0
  %379 = vmatpush1.msra.mxu0 %v349
  %380 = vmatprep.subr.mxu0 0.0
  %381 = vmatpush1.msra.mxu0 %v350
  %382 = vmatprep.subr.mxu0 0.0
  %383 = vmatpush1.msra.mxu0 %v351
  %384 = vmatprep.subr.mxu0 0.0
  %385 = vmatpush1.msra.mxu0 %v352
  %386 = vmatprep.subr.mxu0 0.0
  %387 = vmatpush1.msra.mxu0 %v353
  %388 = vmatprep.subr.mxu0 0.0
  %389 = vmatpush1.msra.mxu0 %v354
  %390 = vmatprep.subr.mxu0 0.0
  %391 = vmatpush1.msra.mxu0 %v355
  %392 = vmatprep.subr.mxu0 0.0
  %393 = vmatpush1.msra.mxu0 %v356
  %394 = vmatprep.subr.mxu0 0.0
  %395 = vmatpush1.msra.mxu0 %v357
  %396 = vmatprep.subr.mxu0 0.0
  %397 = vmatpush1.msra.mxu0 %v358
  %398 = vmatprep.subr.mxu0 0.0
  %399 = vmatpush1.msra.mxu0 0.0
  %400 = vmatprep.subr.mxu0 0.0
  %401 = vmatpush1.msra.mxu0 0.0
  %402 = vmatprep.subr.mxu0 0.0
  %403 = vmatpush1.msra.mxu0 0.0
  %404 = vmatprep.subr.mxu0 0.0
  %405 = vmatpush1.msra.mxu0 0.0
  %406 = vmatprep.subr.mxu0 0.0
  %407 = vmatpush1.msra.mxu0 0.0
  %408 = vmatprep.subr.mxu0 0.0
  %409 = vmatpush1.msra.mxu0 0.0
  %410 = vmatprep.subr.mxu0 0.0
  %411 = vmatpush1.msra.mxu0 0.0
  %412 = vmatprep.subr.mxu0 0.0
  %413 = vmatpush1.msra.mxu0 0.0
  %414 = vmatprep.subr.mxu0 0.0
  %415 = vmatpush1.msra.mxu0 0.0
  %416 = vmatprep.subr.mxu0 0.0
  %417 = vmatpush1.msra.mxu0 0.0
  %418 = vmatprep.subr.mxu0 0.0
  %419 = vmatpush1.msra.mxu0 0.0
  %420 = vmatprep.subr.mxu0 0.0
  %421 = vmatpush1.msra.mxu0 0.0
  %422 = vmatprep.subr.mxu0 0.0
  %423 = vmatpush1.msra.mxu0 0.0
  %424 = vmatprep.subr.mxu0 0.0
  %425 = vmatpush1.msra.mxu0 0.0
  %426 = vmatprep.subr.mxu0 0.0
  %427 = vmatpush1.msra.mxu0 0.0
  %428 = vmatprep.subr.mxu0 0.0
  %429 = vmatpush1.msra.mxu0 0.0
  %430 = vmatprep.mubr.f32.mxu0 0.0
  %431 = vmatmul.mubr.f32.gmra.mrb[0].mxu0 %v242
  %v432 = vpop.f32.mrb[0].mxu0
  %v433 = vadd.f32 %v364, %v432
  %v434 = vpop.f32.mrb[0].mxu0
  %435 = vdwg.mxu0
  %436 = vmax.xlane.f32.xlu0 %v433
  %v437 = vpop.xlane.xlu0 %436
  %v438 = vsub.f32 %v433, %v437
  %v439 = vmul.f32 %v438, 1.442695
  %v440 = vpow.pop %v439
  %441 = vadd.xlane.f32.xlu0 %v440
  %v442 = vpop.xlane.xlu0 %441
  %v443 = vrcp.pop %v442
  %v444 = vmul.f32 %v442, %v443
  %v445 = vsub.f32 2.0, %v444
  %v446 = vmul.f32 %v443, %v445
  %v447 = vmul.f32 %v440, %v446
  %448 = vst [vmem:[%s9] sm:$0xff] %v447
  // Predicated region
  $region41: #{_rnn_batch_forward_jit.1} parent=0 // pred_check
    _
  $region42: #{_rnn_batch_forward_jit.1} parent=0 // pred_check_branch
    %450 = sbr.rel (0) target = $region44
  $region43: #{_rnn_batch_forward_jit.1} parent=0 // pred_region
    _
  $region44: #{_rnn_batch_forward_jit.1} parent=0 // pred_fallthru
    _
  // Predicated region
  $region45: #{_rnn_batch_forward_jit.1} parent=0 // pred_check
    _
  $region46: #{_rnn_batch_forward_jit.1} parent=0 // pred_check_branch
    %452 = sbr.rel (0) target = $region48
  $region47: #{_rnn_batch_forward_jit.1} parent=0 // pred_region
    _
  $region48: #{_rnn_batch_forward_jit.1} parent=0 // pred_fallthru
    _
  // Predicated region
  $region49: #{_rnn_batch_forward_jit.1} parent=0 // pred_check
    _
  $region50: #{_rnn_batch_forward_jit.1} parent=0 // pred_check_branch
    %454 = sbr.rel (0) target = $region52
  $region51: #{_rnn_batch_forward_jit.1} parent=0 // pred_region
    _
  $region52: #{_rnn_batch_forward_jit.1} parent=0 // pred_fallthru
    _
  // Predicated region
  $region53: #{_rnn_batch_forward_jit.1} parent=0 // pred_check
    _
  $region54: #{_rnn_batch_forward_jit.1} parent=0 // pred_check_branch
    %456 = sbr.rel (0) target = $region56
  $region55: #{_rnn_batch_forward_jit.1} parent=0 // pred_region
    _
  $region56: #{_rnn_batch_forward_jit.1} parent=0 // pred_fallthru
    _

</llo_original>
